<compile_context>
chip_gen: v6e
topology: v6e:2x2x1
jax: 0.10.0
libtpu: 0.0.40
codegen_flags: <defaults>
</compile_context>

<pallas_src>
import functools

import numpy as np
import jax
import jax.numpy as jnp
from jax.experimental import pallas as pl
from jax.experimental.pallas import tpu as pltpu

IMAGENET_MEAN = np.array([0.485, 0.456, 0.406], dtype=np.float32)
IMAGENET_STD = np.array([0.229, 0.224, 0.225], dtype=np.float32)


def _low_pass_mask(radius, h, w):
    """Ideal circular low-pass filter, identical to the PyTorch buffer."""
    ii = np.arange(h, dtype=np.float32)[:, None]
    jj = np.arange(w, dtype=np.float32)[None, :]
    dist2 = (ii - (h - 1) / 2.0) ** 2 + (jj - (w - 1) / 2.0) ** 2
    return (dist2 <= radius ** 2).astype(np.float32)          # (H, W)


def _pick_images_per_block(nc, w, max_b=8):
    """Images packed per grid step.

    Prefer lane-dense blocks (b*w % 128 == 0) that leave >= 2 grid steps (so
    v7x's two TensorCores both get work); otherwise fall back to the whole
    batch in a single step (block == full array, always a legal block shape).
    """
    best = None
    for b in range(1, min(max_b, nc) + 1):
        if nc % b == 0 and (b * w) % 128 == 0 and nc // b >= 2:
            best = b
    return best if best is not None else nc


def _precompute_constants(radius, h, w, nb):
    """Band-cropped, real/imag-stacked DFT constants (all exact, f32)."""
    mask = _low_pass_mask(radius, h, w)                       # (H, W)
    rows = np.nonzero(mask.any(axis=1))[0]
    cols = np.nonzero(mask.any(axis=0))[0]
    if rows.size == 0:                                        # degenerate radius
        rows = np.array([h // 2])
        cols = np.array([w // 2])
    r0, r1 = int(rows[0]), int(rows[-1]) + 1
    c0, c1 = int(cols[0]), int(cols[-1]) + 1
    rh_raw, rw_raw = r1 - r0, c1 - c0
    rh = max(8, ((rh_raw + 7) // 8) * 8)                      # pad band to 8 sublanes
    rw = max(8, ((rw_raw + 7) // 8) * 8)

    u = np.arange(h)
    v = np.arange(w)
    # forward DFT with the fftshift folded in:  Y_shift = Fh @ x @ Fw
    fh = np.exp(-2j * np.pi * np.outer(u - h // 2, u) / h)    # rows = shifted freq
    fw = np.exp(-2j * np.pi * np.outer(v, v - w // 2) / w)    # cols = shifted freq
    # inverse DFT applied to the *shifted* array (reference has no ifftshift)
    gh = np.exp(2j * np.pi * np.outer(u, u) / h)
    gw = np.exp(2j * np.pi * np.outer(v, v) / w)

    pr, pc = rh - rh_raw, rw - rw_raw                         # zero padding (exact)
    ah = np.pad(fh.real[r0:r1, :], ((0, pr), (0, 0)))         # (rh, H)
    bh = np.pad(fh.imag[r0:r1, :], ((0, pr), (0, 0)))
    aw = np.pad(fw.real[:, c0:c1], ((0, 0), (0, pc)))         # (W, rw)
    bw = np.pad(fw.imag[:, c0:c1], ((0, 0), (0, pc)))
    ch = np.pad(gh.real[:, r0:r1], ((0, 0), (0, pr)))         # (H, rh)
    dh = np.pad(gh.imag[:, r0:r1], ((0, 0), (0, pr)))
    cw = np.pad(gw.real[c0:c1, :], ((0, pc), (0, 0)))         # (rw, W)
    dw = np.pad(gw.imag[c0:c1, :], ((0, pc), (0, 0)))
    mb = np.pad(mask[r0:r1, c0:c1], ((0, pr), (0, pc)))       # (rh, rw)

    f32 = lambda a: np.asarray(a, np.float32)
    fhs = f32(np.concatenate([ah, bh], axis=0))               # (2rh, H)   [[ah],[bh]]
    fws = f32(np.concatenate([aw, bw], axis=1))               # (W, 2rw)   [aw | bw]
    ghp = f32(np.block([[ch, -dh], [dh, ch]]))                # (2H, 2rh)
    gws = f32(np.concatenate([cw, dw], axis=0) / (h * w))     # (2rw, W), 1/(HW) folded

    # block-diagonal inverse-W constant: one matmul produces all B images
    # lane-packed, so the final store is lane dense.
    gwbd = np.zeros((nb * 2 * rw, nb * w), np.float32)
    for b in range(nb):
        gwbd[b * 2 * rw:(b + 1) * 2 * rw, b * w:(b + 1) * w] = gws
    # mask tiled to match the [[y_r,-y_i],[y_i,y_r]] layout of all B images
    mbd = f32(np.tile(np.block([[mb, mb], [mb, mb]]), (1, nb)))   # (2rh, nb*2rw)
    return fhs, fws, mbd, ghp, gwbd, rh, rw


def _lowfreq_kernel(mean_ref, std_ref, istd_ref, x_ref,
                    fhs_ref, fws_ref, mbd_ref, ghp_ref, gwbd_ref, o_ref,
                    *, nb, h, w, rh, rw, mm_dtype):
    dot = lambda a, b: jnp.dot(a.astype(mm_dtype), b.astype(mm_dtype),
                               preferred_element_type=jnp.float32)

    # de-normalize: per-lane-column mean/std rows broadcast over H
    x = x_ref[...] * std_ref[...] + mean_ref[...]             # (H, B*W)

    # forward DFT, H direction: real & imag stacked along rows, images along lanes
    t = dot(fhs_ref[...], x)                                  # (2rh, B*W)

    # regroup image lane-blocks into row-blocks so ONE matmul does the W direction
    t_rows = jnp.concatenate([t[:, b * w:(b + 1) * w] for b in range(nb)],
                             axis=0)                          # (B*2rh, W)
    q = dot(t_rows, fws_ref[...])                             # (B*2rh, 2rw)

    # recombine real/imag quadrants per image (tiny banded arrays, VPU add/sub)
    augs = []
    for b in range(nb):
        qb = q[b * 2 * rh:(b + 1) * 2 * rh, :]                # (2rh, 2rw)
        y_r = qb[:rh, :rw] - qb[rh:, rw:]
        y_i = qb[:rh, rw:] + qb[rh:, :rw]
        augs.append(jnp.concatenate(
            [jnp.concatenate([y_r, -y_i], axis=1),
             jnp.concatenate([y_i, y_r], axis=1)], axis=0))   # (2rh, 2rw)
    y = jnp.concatenate(augs, axis=1) * mbd_ref[...]          # (2rh, B*2rw), masked

    # inverse DFT: H direction, then block-diagonal W direction (keeps the B
    # images lane-packed; 1/(H*W) is folded into gwbd)
    lmat = dot(ghp_ref[...], y)                               # (2H, B*2rw)
    z = dot(lmat, gwbd_ref[...])                              # (2H, B*W)
    z_r = z[:h, :]
    z_i = z[h:, :]
    mag = jnp.sqrt(z_r * z_r + z_i * z_i)                     # |ifft2(...)|

    # re-normalize (multiply by precomputed 1/std) and lane-dense store
    o_ref[...] = ((mag - mean_ref[...]) * istd_ref[...]).astype(o_ref.dtype)


def low_freq_target(imgs, radius, *, images_per_block=None,
                    matmul_dtype=jnp.float32):
    """imgs: (N, C=3, H, W) float32 -> (N, C, H, W) float32."""
    n, c, h, w = imgs.shape
    assert c == 3, "module assumes RGB (3 channels)"
    nc = n * c
    nb = (images_per_block if images_per_block is not None
          else _pick_images_per_block(nc, w))
    assert nc % nb == 0
    grid = nc // nb

    fhs, fws, mbd, ghp, gwbd, rh, rw = _precompute_constants(radius, h, w, nb)

    # per-lane-column mean / std / 1/std rows for the (H, NC*W) packed layout
    mean_img = np.tile(IMAGENET_MEAN, n)                      # (NC,) RGB cycling
    std_img = np.tile(IMAGENET_STD, n)
    mean_row = np.repeat(mean_img, w)[None, :].astype(np.float32)   # (1, NC*W)
    std_row = np.repeat(std_img, w)[None, :].astype(np.float32)
    istd_row = (1.0 / std_row).astype(np.float32)

    # lane-pack the images: (N,C,H,W) -> (H, NC*W)  (wrapper-side layout plumbing)
    x2d = jnp.transpose(imgs.reshape(nc, h, w), (1, 0, 2)).reshape(h, nc * w)

    row_spec = pl.BlockSpec((1, nb * w), lambda g: (0, g))
    img_spec = pl.BlockSpec((h, nb * w), lambda g: (0, g))
    const = lambda shp: pl.BlockSpec(tuple(shp), lambda g: (0, 0))

    kernel = functools.partial(_lowfreq_kernel, nb=nb, h=h, w=w, rh=rh, rw=rw,
                               mm_dtype=matmul_dtype)

    out2d = pl.pallas_call(
        kernel,
        out_shape=jax.ShapeDtypeStruct((h, nc * w), jnp.float32),
        grid=(grid,),
        in_specs=[
            row_spec, row_spec, row_spec,      # mean, std, 1/std rows
            img_spec,                          # packed images (H, B*W) per step
            const(fhs.shape),                  # [[ah],[bh]]          (2rh, H)
            const(fws.shape),                  # [aw | bw]            (W, 2rw)
            const(mbd.shape),                  # tiled low-pass mask  (2rh, B*2rw)
            const(ghp.shape),                  # [[ch,-dh],[dh,ch]]   (2H, 2rh)
            const(gwbd.shape),                 # blockdiag([[cw],[dw]]/(HW))
        ],
        out_specs=img_spec,
        compiler_params=pltpu.CompilerParams(
            dimension_semantics=("parallel",)),   # shards steps across v7x's 2 TCs
    )(jnp.asarray(mean_row), jnp.asarray(std_row), jnp.asarray(istd_row), x2d,
      jnp.asarray(fhs), jnp.asarray(fws), jnp.asarray(mbd),
      jnp.asarray(ghp), jnp.asarray(gwbd))

    # unpack lanes back to NCHW
    return out2d.reshape(h, nc, w).transpose(1, 0, 2).reshape(n, c, h, w)


def _reference(imgs, radius):
    """Pure-JAX reference mirroring the PyTorch forward exactly."""
    n, c, h, w = imgs.shape
    mean = jnp.asarray(IMAGENET_MEAN).reshape(1, 3, 1, 1)
    std = jnp.asarray(IMAGENET_STD).reshape(1, 3, 1, 1)
    mask = jnp.asarray(_low_pass_mask(radius, h, w))
    x = imgs * std + mean
    f = jnp.fft.fftshift(jnp.fft.fft2(x), axes=(-2, -1))
    low = jnp.abs(jnp.fft.ifft2(f * mask))
    return (low - mean) / std


if __name__ == "__main__":
    key = jax.random.PRNGKey(0)
    N, C, H, W = 2, 3, 16, 16
    RADIUS = 4
    imgs = jax.random.normal(key, (N, C, H, W), dtype=jnp.float32)

    out = low_freq_target(imgs, RADIUS)
    out = jax.block_until_ready(out)

    ref = _reference(imgs, RADIUS)
    assert out.shape == (N, C, H, W)
    np.testing.assert_allclose(np.asarray(out), np.asarray(ref),
                               rtol=2e-3, atol=2e-3)
    print("KERNEL_OK")
</pallas_src>

<mosaic_0001>
module attributes {stable_mosaic.version = 11 : i64} {
  func.func @_lowfreq_kernel(%arg0: i32, %arg1: memref<1x96xf32, #tpu.memory_space<vmem>>, %arg2: memref<1x96xf32, #tpu.memory_space<vmem>>, %arg3: memref<1x96xf32, #tpu.memory_space<vmem>>, %arg4: memref<16x96xf32, #tpu.memory_space<vmem>>, %arg5: memref<16x16xf32, #tpu.memory_space<vmem>>, %arg6: memref<16x16xf32, #tpu.memory_space<vmem>>, %arg7: memref<16x96xf32, #tpu.memory_space<vmem>>, %arg8: memref<32x16xf32, #tpu.memory_space<vmem>>, %arg9: memref<96x96xf32, #tpu.memory_space<vmem>>, %arg10: memref<16x96xf32, #tpu.memory_space<vmem>>) attributes {dimension_semantics = [#tpu.dimension_semantics<parallel>], iteration_bounds = array<i64: 1>, scalar_prefetch = 0 : i64, scratch_operands = 0 : i64, tpu.core_type = #tpu.core_type<tc>, window_params = [{transform_indices = @transform_0, window_bounds = array<i64: 1, 96>}, {transform_indices = @transform_1, window_bounds = array<i64: 1, 96>}, {transform_indices = @transform_2, window_bounds = array<i64: 1, 96>}, {transform_indices = @transform_3, window_bounds = array<i64: 16, 96>}, {pipeline_mode = #tpu.pipeline_mode<synchronous>, transform_indices = @transform_4, window_bounds = array<i64: 16, 16>}, {pipeline_mode = #tpu.pipeline_mode<synchronous>, transform_indices = @transform_5, window_bounds = array<i64: 16, 16>}, {pipeline_mode = #tpu.pipeline_mode<synchronous>, transform_indices = @transform_6, window_bounds = array<i64: 16, 96>}, {pipeline_mode = #tpu.pipeline_mode<synchronous>, transform_indices = @transform_7, window_bounds = array<i64: 32, 16>}, {pipeline_mode = #tpu.pipeline_mode<synchronous>, transform_indices = @transform_8, window_bounds = array<i64: 96, 96>}, {transform_indices = @transform_9, window_bounds = array<i64: 16, 96>}]} {
    %c0 = arith.constant 0 : index
    %c0_0 = arith.constant 0 : index
    %0 = vector.load %arg4[%c0, %c0_0] : memref<16x96xf32, #tpu.memory_space<vmem>>, vector<16x96xf32>
    %c0_1 = arith.constant 0 : index
    %c0_2 = arith.constant 0 : index
    %1 = vector.load %arg2[%c0_1, %c0_2] : memref<1x96xf32, #tpu.memory_space<vmem>>, vector<1x96xf32>
    %2 = vector.broadcast %1 : vector<1x96xf32> to vector<16x96xf32>
    %3 = arith.mulf %0, %2 : vector<16x96xf32>
    %c0_3 = arith.constant 0 : index
    %c0_4 = arith.constant 0 : index
    %4 = vector.load %arg1[%c0_3, %c0_4] : memref<1x96xf32, #tpu.memory_space<vmem>>, vector<1x96xf32>
    %5 = vector.broadcast %4 : vector<1x96xf32> to vector<16x96xf32>
    %6 = arith.addf %3, %5 : vector<16x96xf32>
    %c0_5 = arith.constant 0 : index
    %c0_6 = arith.constant 0 : index
    %7 = vector.load %arg5[%c0_5, %c0_6] : memref<16x16xf32, #tpu.memory_space<vmem>>, vector<16x16xf32>
    %cst = arith.constant dense<0.000000e+00> : vector<16x96xf32>
    %8 = tpu.matmul %7, %6, %cst {dimension_numbers = #tpu.dot_dimension_numbers<[1], [0], [0], [1], [0, 0, 1, 1], [], []>} : vector<16x16xf32>, vector<16x96xf32>, vector<16x96xf32> -> vector<16x96xf32>
    %9 = vector.extract_strided_slice %8 {offsets = [0, 0], sizes = [16, 16], strides = [1, 1]} : vector<16x96xf32> to vector<16x16xf32>
    %10 = vector.extract_strided_slice %8 {offsets = [0, 16], sizes = [16, 16], strides = [1, 1]} : vector<16x96xf32> to vector<16x16xf32>
    %11 = vector.extract_strided_slice %8 {offsets = [0, 32], sizes = [16, 16], strides = [1, 1]} : vector<16x96xf32> to vector<16x16xf32>
    %12 = vector.extract_strided_slice %8 {offsets = [0, 48], sizes = [16, 16], strides = [1, 1]} : vector<16x96xf32> to vector<16x16xf32>
    %13 = vector.extract_strided_slice %8 {offsets = [0, 64], sizes = [16, 16], strides = [1, 1]} : vector<16x96xf32> to vector<16x16xf32>
    %14 = vector.extract_strided_slice %8 {offsets = [0, 80], sizes = [16, 16], strides = [1, 1]} : vector<16x96xf32> to vector<16x16xf32>
    %15 = tpu.concatenate %9, %10, %11, %12, %13, %14 in 0 : vector<16x16xf32>, vector<16x16xf32>, vector<16x16xf32>, vector<16x16xf32>, vector<16x16xf32>, vector<16x16xf32> -> vector<96x16xf32>
    %c0_7 = arith.constant 0 : index
    %c0_8 = arith.constant 0 : index
    %16 = vector.load %arg6[%c0_7, %c0_8] : memref<16x16xf32, #tpu.memory_space<vmem>>, vector<16x16xf32>
    %cst_9 = arith.constant dense<0.000000e+00> : vector<96x16xf32>
    %17 = tpu.matmul %15, %16, %cst_9 {dimension_numbers = #tpu.dot_dimension_numbers<[1], [0], [0], [1], [0, 0, 1, 1], [], []>} : vector<96x16xf32>, vector<16x16xf32>, vector<96x16xf32> -> vector<96x16xf32>
    %18 = vector.extract_strided_slice %17 {offsets = [0, 0], sizes = [16, 16], strides = [1, 1]} : vector<96x16xf32> to vector<16x16xf32>
    %19 = vector.extract_strided_slice %18 {offsets = [0, 0], sizes = [8, 8], strides = [1, 1]} : vector<16x16xf32> to vector<8x8xf32>
    %20 = vector.extract_strided_slice %18 {offsets = [8, 8], sizes = [8, 8], strides = [1, 1]} : vector<16x16xf32> to vector<8x8xf32>
    %21 = arith.subf %19, %20 : vector<8x8xf32>
    %22 = vector.extract_strided_slice %18 {offsets = [0, 8], sizes = [8, 8], strides = [1, 1]} : vector<16x16xf32> to vector<8x8xf32>
    %23 = vector.extract_strided_slice %18 {offsets = [8, 0], sizes = [8, 8], strides = [1, 1]} : vector<16x16xf32> to vector<8x8xf32>
    %24 = arith.addf %22, %23 : vector<8x8xf32>
    %cst_10 = arith.constant 0.000000e+00 : f32
    %25 = vector.broadcast %cst_10 : f32 to vector<8x8xf32>
    %26 = arith.subf %25, %24 : vector<8x8xf32>
    %27 = tpu.concatenate %21, %26 in 1 : vector<8x8xf32>, vector<8x8xf32> -> vector<8x16xf32>
    %28 = tpu.concatenate %24, %21 in 1 : vector<8x8xf32>, vector<8x8xf32> -> vector<8x16xf32>
    %29 = tpu.concatenate %27, %28 in 0 : vector<8x16xf32>, vector<8x16xf32> -> vector<16x16xf32>
    %30 = vector.extract_strided_slice %17 {offsets = [16, 0], sizes = [16, 16], strides = [1, 1]} : vector<96x16xf32> to vector<16x16xf32>
    %31 = vector.extract_strided_slice %30 {offsets = [0, 0], sizes = [8, 8], strides = [1, 1]} : vector<16x16xf32> to vector<8x8xf32>
    %32 = vector.extract_strided_slice %30 {offsets = [8, 8], sizes = [8, 8], strides = [1, 1]} : vector<16x16xf32> to vector<8x8xf32>
    %33 = arith.subf %31, %32 : vector<8x8xf32>
    %34 = vector.extract_strided_slice %30 {offsets = [0, 8], sizes = [8, 8], strides = [1, 1]} : vector<16x16xf32> to vector<8x8xf32>
    %35 = vector.extract_strided_slice %30 {offsets = [8, 0], sizes = [8, 8], strides = [1, 1]} : vector<16x16xf32> to vector<8x8xf32>
    %36 = arith.addf %34, %35 : vector<8x8xf32>
    %cst_11 = arith.constant 0.000000e+00 : f32
    %37 = vector.broadcast %cst_11 : f32 to vector<8x8xf32>
    %38 = arith.subf %37, %36 : vector<8x8xf32>
    %39 = tpu.concatenate %33, %38 in 1 : vector<8x8xf32>, vector<8x8xf32> -> vector<8x16xf32>
    %40 = tpu.concatenate %36, %33 in 1 : vector<8x8xf32>, vector<8x8xf32> -> vector<8x16xf32>
    %41 = tpu.concatenate %39, %40 in 0 : vector<8x16xf32>, vector<8x16xf32> -> vector<16x16xf32>
    %42 = vector.extract_strided_slice %17 {offsets = [32, 0], sizes = [16, 16], strides = [1, 1]} : vector<96x16xf32> to vector<16x16xf32>
    %43 = vector.extract_strided_slice %42 {offsets = [0, 0], sizes = [8, 8], strides = [1, 1]} : vector<16x16xf32> to vector<8x8xf32>
    %44 = vector.extract_strided_slice %42 {offsets = [8, 8], sizes = [8, 8], strides = [1, 1]} : vector<16x16xf32> to vector<8x8xf32>
    %45 = arith.subf %43, %44 : vector<8x8xf32>
    %46 = vector.extract_strided_slice %42 {offsets = [0, 8], sizes = [8, 8], strides = [1, 1]} : vector<16x16xf32> to vector<8x8xf32>
    %47 = vector.extract_strided_slice %42 {offsets = [8, 0], sizes = [8, 8], strides = [1, 1]} : vector<16x16xf32> to vector<8x8xf32>
    %48 = arith.addf %46, %47 : vector<8x8xf32>
    %cst_12 = arith.constant 0.000000e+00 : f32
    %49 = vector.broadcast %cst_12 : f32 to vector<8x8xf32>
    %50 = arith.subf %49, %48 : vector<8x8xf32>
    %51 = tpu.concatenate %45, %50 in 1 : vector<8x8xf32>, vector<8x8xf32> -> vector<8x16xf32>
    %52 = tpu.concatenate %48, %45 in 1 : vector<8x8xf32>, vector<8x8xf32> -> vector<8x16xf32>
    %53 = tpu.concatenate %51, %52 in 0 : vector<8x16xf32>, vector<8x16xf32> -> vector<16x16xf32>
    %54 = vector.extract_strided_slice %17 {offsets = [48, 0], sizes = [16, 16], strides = [1, 1]} : vector<96x16xf32> to vector<16x16xf32>
    %55 = vector.extract_strided_slice %54 {offsets = [0, 0], sizes = [8, 8], strides = [1, 1]} : vector<16x16xf32> to vector<8x8xf32>
    %56 = vector.extract_strided_slice %54 {offsets = [8, 8], sizes = [8, 8], strides = [1, 1]} : vector<16x16xf32> to vector<8x8xf32>
    %57 = arith.subf %55, %56 : vector<8x8xf32>
    %58 = vector.extract_strided_slice %54 {offsets = [0, 8], sizes = [8, 8], strides = [1, 1]} : vector<16x16xf32> to vector<8x8xf32>
    %59 = vector.extract_strided_slice %54 {offsets = [8, 0], sizes = [8, 8], strides = [1, 1]} : vector<16x16xf32> to vector<8x8xf32>
    %60 = arith.addf %58, %59 : vector<8x8xf32>
    %cst_13 = arith.constant 0.000000e+00 : f32
    %61 = vector.broadcast %cst_13 : f32 to vector<8x8xf32>
    %62 = arith.subf %61, %60 : vector<8x8xf32>
    %63 = tpu.concatenate %57, %62 in 1 : vector<8x8xf32>, vector<8x8xf32> -> vector<8x16xf32>
    %64 = tpu.concatenate %60, %57 in 1 : vector<8x8xf32>, vector<8x8xf32> -> vector<8x16xf32>
    %65 = tpu.concatenate %63, %64 in 0 : vector<8x16xf32>, vector<8x16xf32> -> vector<16x16xf32>
    %66 = vector.extract_strided_slice %17 {offsets = [64, 0], sizes = [16, 16], strides = [1, 1]} : vector<96x16xf32> to vector<16x16xf32>
    %67 = vector.extract_strided_slice %66 {offsets = [0, 0], sizes = [8, 8], strides = [1, 1]} : vector<16x16xf32> to vector<8x8xf32>
    %68 = vector.extract_strided_slice %66 {offsets = [8, 8], sizes = [8, 8], strides = [1, 1]} : vector<16x16xf32> to vector<8x8xf32>
    %69 = arith.subf %67, %68 : vector<8x8xf32>
    %70 = vector.extract_strided_slice %66 {offsets = [0, 8], sizes = [8, 8], strides = [1, 1]} : vector<16x16xf32> to vector<8x8xf32>
    %71 = vector.extract_strided_slice %66 {offsets = [8, 0], sizes = [8, 8], strides = [1, 1]} : vector<16x16xf32> to vector<8x8xf32>
    %72 = arith.addf %70, %71 : vector<8x8xf32>
    %cst_14 = arith.constant 0.000000e+00 : f32
    %73 = vector.broadcast %cst_14 : f32 to vector<8x8xf32>
    %74 = arith.subf %73, %72 : vector<8x8xf32>
    %75 = tpu.concatenate %69, %74 in 1 : vector<8x8xf32>, vector<8x8xf32> -> vector<8x16xf32>
    %76 = tpu.concatenate %72, %69 in 1 : vector<8x8xf32>, vector<8x8xf32> -> vector<8x16xf32>
    %77 = tpu.concatenate %75, %76 in 0 : vector<8x16xf32>, vector<8x16xf32> -> vector<16x16xf32>
    %78 = vector.extract_strided_slice %17 {offsets = [80, 0], sizes = [16, 16], strides = [1, 1]} : vector<96x16xf32> to vector<16x16xf32>
    %79 = vector.extract_strided_slice %78 {offsets = [0, 0], sizes = [8, 8], strides = [1, 1]} : vector<16x16xf32> to vector<8x8xf32>
    %80 = vector.extract_strided_slice %78 {offsets = [8, 8], sizes = [8, 8], strides = [1, 1]} : vector<16x16xf32> to vector<8x8xf32>
    %81 = arith.subf %79, %80 : vector<8x8xf32>
    %82 = vector.extract_strided_slice %78 {offsets = [0, 8], sizes = [8, 8], strides = [1, 1]} : vector<16x16xf32> to vector<8x8xf32>
    %83 = vector.extract_strided_slice %78 {offsets = [8, 0], sizes = [8, 8], strides = [1, 1]} : vector<16x16xf32> to vector<8x8xf32>
    %84 = arith.addf %82, %83 : vector<8x8xf32>
    %cst_15 = arith.constant 0.000000e+00 : f32
    %85 = vector.broadcast %cst_15 : f32 to vector<8x8xf32>
    %86 = arith.subf %85, %84 : vector<8x8xf32>
    %87 = tpu.concatenate %81, %86 in 1 : vector<8x8xf32>, vector<8x8xf32> -> vector<8x16xf32>
    %88 = tpu.concatenate %84, %81 in 1 : vector<8x8xf32>, vector<8x8xf32> -> vector<8x16xf32>
    %89 = tpu.concatenate %87, %88 in 0 : vector<8x16xf32>, vector<8x16xf32> -> vector<16x16xf32>
    %90 = tpu.concatenate %29, %41, %53, %65, %77, %89 in 1 : vector<16x16xf32>, vector<16x16xf32>, vector<16x16xf32>, vector<16x16xf32>, vector<16x16xf32>, vector<16x16xf32> -> vector<16x96xf32>
    %c0_16 = arith.constant 0 : index
    %c0_17 = arith.constant 0 : index
    %91 = vector.load %arg7[%c0_16, %c0_17] : memref<16x96xf32, #tpu.memory_space<vmem>>, vector<16x96xf32>
    %92 = arith.mulf %90, %91 : vector<16x96xf32>
    %c0_18 = arith.constant 0 : index
    %c0_19 = arith.constant 0 : index
    %93 = vector.load %arg8[%c0_18, %c0_19] : memref<32x16xf32, #tpu.memory_space<vmem>>, vector<32x16xf32>
    %cst_20 = arith.constant dense<0.000000e+00> : vector<32x96xf32>
    %94 = tpu.matmul %93, %92, %cst_20 {dimension_numbers = #tpu.dot_dimension_numbers<[1], [0], [0], [1], [0, 0, 1, 1], [], []>} : vector<32x16xf32>, vector<16x96xf32>, vector<32x96xf32> -> vector<32x96xf32>
    %c0_21 = arith.constant 0 : index
    %c0_22 = arith.constant 0 : index
    %95 = vector.load %arg9[%c0_21, %c0_22] : memref<96x96xf32, #tpu.memory_space<vmem>>, vector<96x96xf32>
    %cst_23 = arith.constant dense<0.000000e+00> : vector<32x96xf32>
    %96 = tpu.matmul %94, %95, %cst_23 {dimension_numbers = #tpu.dot_dimension_numbers<[1], [0], [0], [1], [0, 0, 1, 1], [], []>} : vector<32x96xf32>, vector<96x96xf32>, vector<32x96xf32> -> vector<32x96xf32>
    %97 = vector.extract_strided_slice %96 {offsets = [0, 0], sizes = [16, 96], strides = [1, 1]} : vector<32x96xf32> to vector<16x96xf32>
    %98 = vector.extract_strided_slice %96 {offsets = [16, 0], sizes = [16, 96], strides = [1, 1]} : vector<32x96xf32> to vector<16x96xf32>
    %99 = arith.mulf %97, %97 : vector<16x96xf32>
    %100 = arith.mulf %98, %98 : vector<16x96xf32>
    %101 = arith.addf %99, %100 : vector<16x96xf32>
    %102 = math.sqrt %101 : vector<16x96xf32>
    %c0_24 = arith.constant 0 : index
    %c0_25 = arith.constant 0 : index
    %103 = vector.load %arg1[%c0_24, %c0_25] : memref<1x96xf32, #tpu.memory_space<vmem>>, vector<1x96xf32>
    %104 = vector.broadcast %103 : vector<1x96xf32> to vector<16x96xf32>
    %105 = arith.subf %102, %104 : vector<16x96xf32>
    %c0_26 = arith.constant 0 : index
    %c0_27 = arith.constant 0 : index
    %106 = vector.load %arg3[%c0_26, %c0_27] : memref<1x96xf32, #tpu.memory_space<vmem>>, vector<1x96xf32>
    %107 = vector.broadcast %106 : vector<1x96xf32> to vector<16x96xf32>
    %108 = arith.mulf %105, %107 : vector<16x96xf32>
    %c0_28 = arith.constant 0 : index
    %c0_29 = arith.constant 0 : index
    %109 = vector.load %arg10[%c0_28, %c0_29] : memref<16x96xf32, #tpu.memory_space<vmem>>, vector<16x96xf32>
    tpu.vector_store %arg10[%c0_28, %c0_29], %108 {strides = array<i32>} : memref<16x96xf32, #tpu.memory_space<vmem>>, vector<16x96xf32>,
    return
  }
  func.func @transform_0(%arg0: i32) -> (i32, i32) {
    %c0_i32 = arith.constant 0 : i32
    %c0_i32_0 = arith.constant 0 : i32
    return %c0_i32, %arg0 : i32, i32
  }
  func.func @transform_1(%arg0: i32) -> (i32, i32) {
    %c0_i32 = arith.constant 0 : i32
    %c0_i32_0 = arith.constant 0 : i32
    return %c0_i32, %arg0 : i32, i32
  }
  func.func @transform_2(%arg0: i32) -> (i32, i32) {
    %c0_i32 = arith.constant 0 : i32
    %c0_i32_0 = arith.constant 0 : i32
    return %c0_i32, %arg0 : i32, i32
  }
  func.func @transform_3(%arg0: i32) -> (i32, i32) {
    %c0_i32 = arith.constant 0 : i32
    %c0_i32_0 = arith.constant 0 : i32
    return %c0_i32, %arg0 : i32, i32
  }
  func.func @transform_4(%arg0: i32) -> (i32, i32) {
    %c0_i32 = arith.constant 0 : i32
    %c0_i32_0 = arith.constant 0 : i32
    %c0_i32_1 = arith.constant 0 : i32
    return %c0_i32, %c0_i32_0 : i32, i32
  }
  func.func @transform_5(%arg0: i32) -> (i32, i32) {
    %c0_i32 = arith.constant 0 : i32
    %c0_i32_0 = arith.constant 0 : i32
    %c0_i32_1 = arith.constant 0 : i32
    return %c0_i32, %c0_i32_0 : i32, i32
  }
  func.func @transform_6(%arg0: i32) -> (i32, i32) {
    %c0_i32 = arith.constant 0 : i32
    %c0_i32_0 = arith.constant 0 : i32
    %c0_i32_1 = arith.constant 0 : i32
    return %c0_i32, %c0_i32_0 : i32, i32
  }
  func.func @transform_7(%arg0: i32) -> (i32, i32) {
    %c0_i32 = arith.constant 0 : i32
    %c0_i32_0 = arith.constant 0 : i32
    %c0_i32_1 = arith.constant 0 : i32
    return %c0_i32, %c0_i32_0 : i32, i32
  }
  func.func @transform_8(%arg0: i32) -> (i32, i32) {
    %c0_i32 = arith.constant 0 : i32
    %c0_i32_0 = arith.constant 0 : i32
    %c0_i32_1 = arith.constant 0 : i32
    return %c0_i32, %c0_i32_0 : i32, i32
  }
  func.func @transform_9(%arg0: i32) -> (i32, i32) {
    %c0_i32 = arith.constant 0 : i32
    %c0_i32_0 = arith.constant 0 : i32
    return %c0_i32, %arg0 : i32, i32
  }
}

</mosaic_0001>

<llo_original>
// kernel: tpu_custom_call.1
$region0: #{tpu_custom_call.1}
  #allocation0 [shape = 'u32[]', space=smem, size = 0x4, offset = 0x4, fixed_abs, tag = 'smem constant byte address 0x4 - core index']
  #allocation1 [shape = 'u32[144,128]{1,0:T(1,128)}', space=vmem, size = 0x12000, scoped, tag = 'internal scratch']
  %s0 = inlined_call_operand.hbm [shape: f32[1,96], index: 0, kind: input, shape index: {}]
  %s1 = inlined_call_operand.vmem [shape: f32[1,96], index: 1, kind: input, shape index: {}]
  %s2 = inlined_call_operand.vmem [shape: f32[1,96], index: 2, kind: input, shape index: {}]
  %s3 = inlined_call_operand.vmem [shape: f32[16,96], index: 3, kind: input, shape index: {}]
  %s4 = inlined_call_operand.vmem [shape: f32[16,16], index: 4, kind: input, shape index: {}]
  %s5 = inlined_call_operand.vmem [shape: f32[16,16], index: 5, kind: input, shape index: {}]
  %s6 = inlined_call_operand.hbm [shape: f32[16,96], index: 6, kind: input, shape index: {}]
  %s7 = inlined_call_operand.vmem [shape: f32[32,16], index: 7, kind: input, shape index: {}]
  %s8 = inlined_call_operand.hbm [shape: f32[96,96], index: 8, kind: input, shape index: {}]
  %s9 = inlined_call_operand.hbm [shape: f32[16,96], index: 9, kind: output, shape index: {}]
  %s10 = sld [smem:[#allocation0]]
  $region58: #{tpu_custom_call.1} parent=0
    _
  %s12 = ssub.s32 1, %s10
  %s13 = scalar_select 0, %s12, %s10
  $region1: #{tpu_custom_call.1} parent=0
    #allocation2 [shape = 'u8[512]{0}', space=vmem, size = 0x400, scoped, tag = 'input window, operand 0, single buffered']
    #allocation3 [shape = 's32[1]{0}', space=sflag, size = 0x4, scoped, tag = 'scoped memory for tpu_custom_call.1']
    #allocation4 [shape = 's32[1]{0}', space=sflag, size = 0x4, scoped, tag = 'scoped memory for tpu_custom_call.1']
    #allocation5 [shape = 'u8[8192]{0}', space=vmem, size = 0x2000, scoped, tag = 'input window, operand 6, single buffered']
    #allocation6 [shape = 's32[1]{0}', space=sflag, size = 0x4, scoped, tag = 'scoped memory for tpu_custom_call.1']
    #allocation7 [shape = 'u8[49152]{0}', space=vmem, size = 0xc000, scoped, tag = 'input window, operand 8, single buffered']
    #allocation8 [shape = 'u8[8192]{0}', space=vmem, size = 0x2000, scoped, tag = 'output window, operand 0, single buffered']
    %14 = vsyncpa [#allocation3], 0
    %15 = vsyncpa [#allocation6], 0
    %16 = vsyncpa [#allocation4], 0
    // Predicated region
    $region2: #{tpu_custom_call.1} parent=1 // pred_check
      _
    $region3: #{tpu_custom_call.1} parent=1 // pred_check_branch
      %18 = sbr.rel (0) target = $region5
    $region4: #{tpu_custom_call.1} parent=1 // pred_region
      %s20 = ssub.s32 16, 16
      %21 = vsyncadd [#allocation3], %s20
      %s23 = sshll.u32 [#allocation2], 4
      %s24 = int_to_ptr.vmem [resolvable:$true] %s23
      %26 = dma.hbm_to_vmem [thread:$0]  %s0, 16, %s24, [#allocation3]
    $region5: #{tpu_custom_call.1} parent=1 // pred_fallthru
      _
    // Predicated region
    $region6: #{tpu_custom_call.1} parent=1 // pred_check
      _
    $region7: #{tpu_custom_call.1} parent=1 // pred_check_branch
      %28 = sbr.rel (0) target = $region9
    $region8: #{tpu_custom_call.1} parent=1 // pred_region
      _
    $region9: #{tpu_custom_call.1} parent=1 // pred_fallthru
      _
    // Predicated region
    $region10: #{tpu_custom_call.1} parent=1 // pred_check
      _
    $region11: #{tpu_custom_call.1} parent=1 // pred_check_branch
      %30 = sbr.rel (0) target = $region13
    $region12: #{tpu_custom_call.1} parent=1 // pred_region
      _
    $region13: #{tpu_custom_call.1} parent=1 // pred_fallthru
      _
    // Predicated region
    $region14: #{tpu_custom_call.1} parent=1 // pred_check
      _
    $region15: #{tpu_custom_call.1} parent=1 // pred_check_branch
      %32 = sbr.rel (0) target = $region17
    $region16: #{tpu_custom_call.1} parent=1 // pred_region
      _
    $region17: #{tpu_custom_call.1} parent=1 // pred_fallthru
      _
    // Predicated region
    $region18: #{tpu_custom_call.1} parent=1 // pred_check
      _
    $region19: #{tpu_custom_call.1} parent=1 // pred_check_branch
      %34 = sbr.rel (0) target = $region21
    $region20: #{tpu_custom_call.1} parent=1 // pred_region
      _
    $region21: #{tpu_custom_call.1} parent=1 // pred_fallthru
      _
    // Predicated region
    $region22: #{tpu_custom_call.1} parent=1 // pred_check
      _
    $region23: #{tpu_custom_call.1} parent=1 // pred_check_branch
      %36 = sbr.rel (0) target = $region25
    $region24: #{tpu_custom_call.1} parent=1 // pred_region
      _
    $region25: #{tpu_custom_call.1} parent=1 // pred_fallthru
      _
    // Predicated region
    $region26: #{tpu_custom_call.1} parent=1 // pred_check
      _
    $region27: #{tpu_custom_call.1} parent=1 // pred_check_branch
      %38 = sbr.rel (0) target = $region29
    $region28: #{tpu_custom_call.1} parent=1 // pred_region
      %s40 = ssub.s32 256, 256
      %41 = vsyncadd [#allocation6], %s40
      %s42 = sshll.u32 [#allocation5], 4
      %s43 = int_to_ptr.vmem [resolvable:$true] %s42
      %48 = dma.hbm_to_vmem [thread:$0]  %s6, 256, %s43, [#allocation6], 128, 128, 8
    $region29: #{tpu_custom_call.1} parent=1 // pred_fallthru
      _
    // Predicated region
    $region30: #{tpu_custom_call.1} parent=1 // pred_check
      _
    $region31: #{tpu_custom_call.1} parent=1 // pred_check_branch
      %50 = sbr.rel (0) target = $region33
    $region32: #{tpu_custom_call.1} parent=1 // pred_region
      _
    $region33: #{tpu_custom_call.1} parent=1 // pred_fallthru
      _
    // Predicated region
    $region34: #{tpu_custom_call.1} parent=1 // pred_check
      _
    $region35: #{tpu_custom_call.1} parent=1 // pred_check_branch
      %52 = sbr.rel (0) target = $region37
    $region36: #{tpu_custom_call.1} parent=1 // pred_region
      %s54 = ssub.s32 1536, 1536
      %55 = vsyncadd [#allocation6], %s54
      %s56 = sshll.u32 [#allocation7], 4
      %s57 = int_to_ptr.vmem [resolvable:$true] %s56
      %62 = dma.hbm_to_vmem [thread:$0]  %s8, 1536, %s57, [#allocation6], 128, 128, 8
    $region37: #{tpu_custom_call.1} parent=1 // pred_fallthru
      _
    // Predicated region
    $region38: #{tpu_custom_call.1} parent=1 // pred_check
      _
    $region39: #{tpu_custom_call.1} parent=1 // pred_check_branch
      %64 = sbr.rel (0) target = $region41
    $region40: #{tpu_custom_call.1} parent=1 // pred_region
      %65 = dma.done [#allocation3], 16
    $region41: #{tpu_custom_call.1} parent=1 // pred_fallthru
      _
    // Predicated region
    $region42: #{tpu_custom_call.1} parent=1 // pred_check
      _
    $region43: #{tpu_custom_call.1} parent=1 // pred_check_branch
      %67 = sbr.rel (0) target = $region45
    $region44: #{tpu_custom_call.1} parent=1 // pred_region
      %68 = dma.done [#allocation6], 256
    $region45: #{tpu_custom_call.1} parent=1 // pred_fallthru
      _
    // Predicated region
    $region46: #{tpu_custom_call.1} parent=1 // pred_check
      _
    $region47: #{tpu_custom_call.1} parent=1 // pred_check_branch
      %70 = sbr.rel (0) target = $region49
    $region48: #{tpu_custom_call.1} parent=1 // pred_region
      %71 = dma.done [#allocation6], 1536
    $region49: #{tpu_custom_call.1} parent=1 // pred_fallthru
      _
    %v72 = vld [vmem:[%s3] sm:$0xff]
    %v73 = vld [vmem:[%s3 + $0x8] sm:$0xff]
    %v74 = vld [vmem:[%s1] sm:$0x1]
    %v76 = vlaneseq
    %v77 = vshrl.u32 %v76, 7
    %v78 = vsub.s32 0, %v77
    %v79 = vrot.slane %v74, %v78
    %v81 = vmul.f32 %v72, %v79
    %v82 = vmul.f32 %v73, %v79
    %v83 = vld [vmem:[#allocation2] sm:$0x1]
    %v85 = vlaneseq
    %v86 = vshrl.u32 %v85, 7
    %v87 = vsub.s32 0, %v86
    %v88 = vrot.slane %v83, %v87
    %v90 = vadd.f32 %v81, %v88
    %v91 = vadd.f32 %v82, %v88
    %v92 = vld [vmem:[%s4] sm:$0xff]
    %v93 = vld [vmem:[%s4 + $0x8] sm:$0xff]
    %vm94 = vcmask 130048
    %v96 = vsel %vm94, %v92, 0
    %v99 = vsel %vm94, %v93, 0
    %101 = vmatprep.subr.mxu0 0.0
    %102 = vmatpush1.msra.mxu0 0.0
    %103 = vmatprep.subr.mxu0 0.0
    %104 = vmatpush1.msra.mxu0 0.0
    %105 = vmatprep.subr.mxu0 0.0
    %106 = vmatpush1.msra.mxu0 0.0
    %107 = vmatprep.subr.mxu0 0.0
    %108 = vmatpush1.msra.mxu0 0.0
    %109 = vmatprep.subr.mxu0 0.0
    %110 = vmatpush1.msra.mxu0 0.0
    %111 = vmatprep.subr.mxu0 0.0
    %112 = vmatpush1.msra.mxu0 0.0
    %113 = vmatprep.subr.mxu0 0.0
    %114 = vmatpush1.msra.mxu0 0.0
    %115 = vmatprep.subr.mxu0 0.0
    %116 = vmatpush1.msra.mxu0 0.0
    %117 = vmatprep.subr.mxu0 0.0
    %118 = vmatpush1.msra.mxu0 0.0
    %119 = vmatprep.subr.mxu0 0.0
    %120 = vmatpush1.msra.mxu0 0.0
    %121 = vmatprep.subr.mxu0 0.0
    %122 = vmatpush1.msra.mxu0 0.0
    %123 = vmatprep.subr.mxu0 0.0
    %124 = vmatpush1.msra.mxu0 0.0
    %125 = vmatprep.subr.mxu0 0.0
    %126 = vmatpush1.msra.mxu0 0.0
    %127 = vmatprep.subr.mxu0 0.0
    %128 = vmatpush1.msra.mxu0 0.0
    %129 = vmatprep.subr.mxu0 0.0
    %130 = vmatpush1.msra.mxu0 %v91
    %131 = vmatprep.subr.mxu0 0.0
    %132 = vmatpush1.msra.mxu0 %v90
    %133 = vmatprep.subr.mxu0 0.0
    %134 = vmatpush2.msra.mxu0 0.0
    %135 = vmatprep.subr.mxu0 0.0
    %136 = vmatpush2.msra.mxu0 0.0
    %137 = vmatprep.subr.mxu0 0.0
    %138 = vmatpush2.msra.mxu0 0.0
    %139 = vmatprep.subr.mxu0 0.0
    %140 = vmatpush2.msra.mxu0 0.0
    %141 = vmatprep.subr.mxu0 0.0
    %142 = vmatpush2.msra.mxu0 0.0
    %143 = vmatprep.subr.mxu0 0.0
    %144 = vmatpush2.msra.mxu0 0.0
    %145 = vmatprep.subr.mxu0 0.0
    %146 = vmatpush2.msra.mxu0 0.0
    %147 = vmatprep.subr.mxu0 0.0
    %148 = vmatpush2.msra.mxu0 0.0
    %149 = vmatprep.subr.mxu0 0.0
    %150 = vmatpush2.msra.mxu0 0.0
    %151 = vmatprep.subr.mxu0 0.0
    %152 = vmatpush2.msra.mxu0 0.0
    %153 = vmatprep.subr.mxu0 0.0
    %154 = vmatpush2.msra.mxu0 0.0
    %155 = vmatprep.subr.mxu0 0.0
    %156 = vmatpush2.msra.mxu0 0.0
    %157 = vmatprep.subr.mxu0 0.0
    %158 = vmatpush2.msra.mxu0 0.0
    %159 = vmatprep.subr.mxu0 0.0
    %160 = vmatpush2.msra.mxu0 0.0
    %161 = vmatprep.subr.mxu0 0.0
    %162 = vmatpush2.msra.mxu0 0.0
    %163 = vmatprep.subr.mxu0 0.0
    %164 = vmatpush2.msra.mxu0 0.0
    %165 = vmatprep.mubr.f32.mxu0 0.0
    %166 = vmatmul.mubr.f32.gmra.mxu0 %v96
    %v167 = vpop.f32.mrf.mxu0
    %v168 = vadd.f32 0.0, %v167
    %v169 = vpop.f32.mrf.mxu0
    %170 = vmatprep.mubr.f32.mxu0 0.0
    %171 = vmatmul.mubr.f32.gmra.mxu0 %v99
    %v172 = vpop.f32.mrf.mxu0
    %v173 = vadd.f32 0.0, %v172
    %v174 = vpop.f32.mrf.mxu0
    %175 = vdwg.mxu0
    %178 = vrot.lane.b32.xlu0 %v168, 112
    %v179 = vpop.permute.xlu0 %178
    %180 = vrot.lane.b32.xlu0 %v173, 112
    %v181 = vpop.permute.xlu0 %180
    %182 = vrot.lane.b32.xlu0 %v168, 96
    %v183 = vpop.permute.xlu0 %182
    %184 = vrot.lane.b32.xlu0 %v173, 96
    %v185 = vpop.permute.xlu0 %184
    %186 = vrot.lane.b32.xlu0 %v168, 80
    %v187 = vpop.permute.xlu0 %186
    %188 = vrot.lane.b32.xlu0 %v173, 80
    %v189 = vpop.permute.xlu0 %188
    %190 = vrot.lane.b32.xlu0 %v168, 64
    %v191 = vpop.permute.xlu0 %190
    %192 = vrot.lane.b32.xlu0 %v173, 64
    %v193 = vpop.permute.xlu0 %192
    %194 = vrot.lane.b32.xlu0 %v168, 48
    %v195 = vpop.permute.xlu0 %194
    %196 = vrot.lane.b32.xlu0 %v173, 48
    %v197 = vpop.permute.xlu0 %196
    %v198 = vld [vmem:[%s5] sm:$0xff]
    %v199 = vld [vmem:[%s5 + $0x8] sm:$0xff]
    %v200 = vsel %vm94, %v168, 0
    %v202 = vsel %vm94, %v173, 0
    %v204 = vsel %vm94, %v179, 0
    %v206 = vsel %vm94, %v181, 0
    %v208 = vsel %vm94, %v183, 0
    %v210 = vsel %vm94, %v185, 0
    %v212 = vsel %vm94, %v187, 0
    %v214 = vsel %vm94, %v189, 0
    %v216 = vsel %vm94, %v191, 0
    %v218 = vsel %vm94, %v193, 0
    %v220 = vsel %vm94, %v195, 0
    %v222 = vsel %vm94, %v197, 0
    %224 = vmatprep.subr.mxu0 0.0
    %225 = vmatpush1.msra.mxu0 0.0
    %226 = vmatprep.subr.mxu0 0.0
    %227 = vmatpush1.msra.mxu0 0.0
    %228 = vmatprep.subr.mxu0 0.0
    %229 = vmatpush1.msra.mxu0 0.0
    %230 = vmatprep.subr.mxu0 0.0
    %231 = vmatpush1.msra.mxu0 0.0
    %232 = vmatprep.subr.mxu0 0.0
    %233 = vmatpush1.msra.mxu0 0.0
    %234 = vmatprep.subr.mxu0 0.0
    %235 = vmatpush1.msra.mxu0 0.0
    %236 = vmatprep.subr.mxu0 0.0
    %237 = vmatpush1.msra.mxu0 0.0
    %238 = vmatprep.subr.mxu0 0.0
    %239 = vmatpush1.msra.mxu0 0.0
    %240 = vmatprep.subr.mxu0 0.0
    %241 = vmatpush1.msra.mxu0 0.0
    %242 = vmatprep.subr.mxu0 0.0
    %243 = vmatpush1.msra.mxu0 0.0
    %244 = vmatprep.subr.mxu0 0.0
    %245 = vmatpush1.msra.mxu0 0.0
    %246 = vmatprep.subr.mxu0 0.0
    %247 = vmatpush1.msra.mxu0 0.0
    %248 = vmatprep.subr.mxu0 0.0
    %249 = vmatpush1.msra.mxu0 0.0
    %250 = vmatprep.subr.mxu0 0.0
    %251 = vmatpush1.msra.mxu0 0.0
    %252 = vmatprep.subr.mxu0 0.0
    %253 = vmatpush1.msra.mxu0 %v199
    %254 = vmatprep.subr.mxu0 0.0
    %255 = vmatpush1.msra.mxu0 %v198
    %256 = vmatprep.subr.mxu0 0.0
    %257 = vmatpush2.msra.mxu0 0.0
    %258 = vmatprep.subr.mxu0 0.0
    %259 = vmatpush2.msra.mxu0 0.0
    %260 = vmatprep.subr.mxu0 0.0
    %261 = vmatpush2.msra.mxu0 0.0
    %262 = vmatprep.subr.mxu0 0.0
    %263 = vmatpush2.msra.mxu0 0.0
    %264 = vmatprep.subr.mxu0 0.0
    %265 = vmatpush2.msra.mxu0 0.0
    %266 = vmatprep.subr.mxu0 0.0
    %267 = vmatpush2.msra.mxu0 0.0
    %268 = vmatprep.subr.mxu0 0.0
    %269 = vmatpush2.msra.mxu0 0.0
    %270 = vmatprep.subr.mxu0 0.0
    %271 = vmatpush2.msra.mxu0 0.0
    %272 = vmatprep.subr.mxu0 0.0
    %273 = vmatpush2.msra.mxu0 0.0
    %274 = vmatprep.subr.mxu0 0.0
    %275 = vmatpush2.msra.mxu0 0.0
    %276 = vmatprep.subr.mxu0 0.0
    %277 = vmatpush2.msra.mxu0 0.0
    %278 = vmatprep.subr.mxu0 0.0
    %279 = vmatpush2.msra.mxu0 0.0
    %280 = vmatprep.subr.mxu0 0.0
    %281 = vmatpush2.msra.mxu0 0.0
    %282 = vmatprep.subr.mxu0 0.0
    %283 = vmatpush2.msra.mxu0 0.0
    %284 = vmatprep.subr.mxu0 0.0
    %285 = vmatpush2.msra.mxu0 0.0
    %286 = vmatprep.subr.mxu0 0.0
    %287 = vmatpush2.msra.mxu0 0.0
    %288 = vmatprep.mubr.f32.mxu0 0.0
    %289 = vmatmul.mubr.f32.gmra.mxu0 %v200
    %v290 = vpop.f32.mrf.mxu0
    %v291 = vadd.f32 0.0, %v290
    %v292 = vpop.f32.mrf.mxu0
    %293 = vmatprep.mubr.f32.mxu0 0.0
    %294 = vmatmul.mubr.f32.gmra.mxu0 %v202
    %v295 = vpop.f32.mrf.mxu0
    %v296 = vadd.f32 0.0, %v295
    %v297 = vpop.f32.mrf.mxu0
    %298 = vmatprep.mubr.f32.mxu0 0.0
    %299 = vmatmul.mubr.f32.gmra.mxu0 %v204
    %v300 = vpop.f32.mrf.mxu0
    %v301 = vadd.f32 0.0, %v300
    %v302 = vpop.f32.mrf.mxu0
    %303 = vmatprep.mubr.f32.mxu0 0.0
    %304 = vmatmul.mubr.f32.gmra.mxu0 %v206
    %v305 = vpop.f32.mrf.mxu0
    %v306 = vadd.f32 0.0, %v305
    %v307 = vpop.f32.mrf.mxu0
    %308 = vmatprep.mubr.f32.mxu0 0.0
    %309 = vmatmul.mubr.f32.gmra.mxu0 %v208
    %v310 = vpop.f32.mrf.mxu0
    %v311 = vadd.f32 0.0, %v310
    %v312 = vpop.f32.mrf.mxu0
    %313 = vmatprep.mubr.f32.mxu0 0.0
    %314 = vmatmul.mubr.f32.gmra.mxu0 %v210
    %v315 = vpop.f32.mrf.mxu0
    %v316 = vadd.f32 0.0, %v315
    %v317 = vpop.f32.mrf.mxu0
    %318 = vmatprep.mubr.f32.mxu0 0.0
    %319 = vmatmul.mubr.f32.gmra.mxu0 %v212
    %v320 = vpop.f32.mrf.mxu0
    %v321 = vadd.f32 0.0, %v320
    %v322 = vpop.f32.mrf.mxu0
    %323 = vmatprep.mubr.f32.mxu0 0.0
    %324 = vmatmul.mubr.f32.gmra.mxu0 %v214
    %v325 = vpop.f32.mrf.mxu0
    %v326 = vadd.f32 0.0, %v325
    %v327 = vpop.f32.mrf.mxu0
    %328 = vmatprep.mubr.f32.mxu0 0.0
    %329 = vmatmul.mubr.f32.gmra.mxu0 %v216
    %v330 = vpop.f32.mrf.mxu0
    %v331 = vadd.f32 0.0, %v330
    %v332 = vpop.f32.mrf.mxu0
    %333 = vmatprep.mubr.f32.mxu0 0.0
    %334 = vmatmul.mubr.f32.gmra.mxu0 %v218
    %v335 = vpop.f32.mrf.mxu0
    %v336 = vadd.f32 0.0, %v335
    %v337 = vpop.f32.mrf.mxu0
    %338 = vmatprep.mubr.f32.mxu0 0.0
    %339 = vmatmul.mubr.f32.gmra.mxu0 %v220
    %v340 = vpop.f32.mrf.mxu0
    %v341 = vadd.f32 0.0, %v340
    %v342 = vpop.f32.mrf.mxu0
    %343 = vmatprep.mubr.f32.mxu0 0.0
    %344 = vmatmul.mubr.f32.gmra.mxu0 %v222
    %v345 = vpop.f32.mrf.mxu0
    %v346 = vadd.f32 0.0, %v345
    %v347 = vpop.f32.mrf.mxu0
    %348 = vdwg.mxu0
    %350 = vrot.lane.b32.xlu0 %v296, 120
    %v351 = vpop.permute.xlu0 %350
    %v353 = vsub.f32 %v291, %v351
    %354 = vrot.lane.b32.xlu0 %v296, 8
    %v355 = vpop.permute.xlu0 %354
    %v357 = vadd.f32 %v291, %v355
    %v358 = vsub.f32 0.0, %v357
    %vm359 = vcmask 64512
    %v360 = vsel %vm359, %v353, %v358
    %362 = vrot.lane.b32.xlu0 %v357, 120
    %v363 = vpop.permute.xlu0 %362
    %366 = vrot.lane.b32.xlu0 %v353, 8
    %v367 = vpop.permute.xlu0 %366
    %v369 = vsel %vm359, %v363, %v367
    %371 = vrot.lane.b32.xlu0 %v306, 120
    %v372 = vpop.permute.xlu0 %371
    %v374 = vsub.f32 %v301, %v372
    %375 = vrot.lane.b32.xlu0 %v306, 8
    %v376 = vpop.permute.xlu0 %375
    %v378 = vadd.f32 %v301, %v376
    %v379 = vsub.f32 0.0, %v378
    %v380 = vsel %vm359, %v374, %v379
    %382 = vrot.lane.b32.xlu0 %v378, 120
    %v383 = vpop.permute.xlu0 %382
    %386 = vrot.lane.b32.xlu0 %v374, 8
    %v387 = vpop.permute.xlu0 %386
    %v389 = vsel %vm359, %v383, %v387
    %391 = vrot.lane.b32.xlu0 %v316, 120
    %v392 = vpop.permute.xlu0 %391
    %v394 = vsub.f32 %v311, %v392
    %395 = vrot.lane.b32.xlu0 %v316, 8
    %v396 = vpop.permute.xlu0 %395
    %v398 = vadd.f32 %v311, %v396
    %v399 = vsub.f32 0.0, %v398
    %v400 = vsel %vm359, %v394, %v399
    %402 = vrot.lane.b32.xlu0 %v398, 120
    %v403 = vpop.permute.xlu0 %402
    %406 = vrot.lane.b32.xlu0 %v394, 8
    %v407 = vpop.permute.xlu0 %406
    %v409 = vsel %vm359, %v403, %v407
    %411 = vrot.lane.b32.xlu0 %v326, 120
    %v412 = vpop.permute.xlu0 %411
    %v414 = vsub.f32 %v321, %v412
    %415 = vrot.lane.b32.xlu0 %v326, 8
    %v416 = vpop.permute.xlu0 %415
    %v418 = vadd.f32 %v321, %v416
    %v419 = vsub.f32 0.0, %v418
    %v420 = vsel %vm359, %v414, %v419
    %422 = vrot.lane.b32.xlu0 %v418, 120
    %v423 = vpop.permute.xlu0 %422
    %426 = vrot.lane.b32.xlu0 %v414, 8
    %v427 = vpop.permute.xlu0 %426
    %v429 = vsel %vm359, %v423, %v427
    %431 = vrot.lane.b32.xlu0 %v336, 120
    %v432 = vpop.permute.xlu0 %431
    %v434 = vsub.f32 %v331, %v432
    %435 = vrot.lane.b32.xlu0 %v336, 8
    %v436 = vpop.permute.xlu0 %435
    %v438 = vadd.f32 %v331, %v436
    %v439 = vsub.f32 0.0, %v438
    %v440 = vsel %vm359, %v434, %v439
    %442 = vrot.lane.b32.xlu0 %v438, 120
    %v443 = vpop.permute.xlu0 %442
    %446 = vrot.lane.b32.xlu0 %v434, 8
    %v447 = vpop.permute.xlu0 %446
    %v449 = vsel %vm359, %v443, %v447
    %451 = vrot.lane.b32.xlu0 %v346, 120
    %v452 = vpop.permute.xlu0 %451
    %v454 = vsub.f32 %v341, %v452
    %455 = vrot.lane.b32.xlu0 %v346, 8
    %v456 = vpop.permute.xlu0 %455
    %v458 = vadd.f32 %v341, %v456
    %v459 = vsub.f32 0.0, %v458
    %v460 = vsel %vm359, %v454, %v459
    %462 = vrot.lane.b32.xlu0 %v458, 120
    %v463 = vpop.permute.xlu0 %462
    %466 = vrot.lane.b32.xlu0 %v454, 8
    %v467 = vpop.permute.xlu0 %466
    %v469 = vsel %vm359, %v463, %v467
    %472 = vrot.lane.b32.xlu0 %v380, 16
    %v473 = vpop.permute.xlu0 %472
    %474 = vrot.lane.b32.xlu0 %v389, 16
    %v475 = vpop.permute.xlu0 %474
    %480 = vrot.lane.b32.xlu0 %v400, 32
    %v481 = vpop.permute.xlu0 %480
    %482 = vrot.lane.b32.xlu0 %v409, 32
    %v483 = vpop.permute.xlu0 %482
    %488 = vrot.lane.b32.xlu0 %v420, 48
    %v489 = vpop.permute.xlu0 %488
    %490 = vrot.lane.b32.xlu0 %v429, 48
    %v491 = vpop.permute.xlu0 %490
    %496 = vrot.lane.b32.xlu0 %v440, 64
    %v497 = vpop.permute.xlu0 %496
    %498 = vrot.lane.b32.xlu0 %v449, 64
    %v499 = vpop.permute.xlu0 %498
    %504 = vrot.lane.b32.xlu0 %v460, 80
    %v505 = vpop.permute.xlu0 %504
    %506 = vrot.lane.b32.xlu0 %v469, 80
    %v507 = vpop.permute.xlu0 %506
    %v510 = vsel %vm94, %v360, %v473
    %v511 = vsel %vm94, %v369, %v475
    %vm512 = vcmask 261120
    %v513 = vsel %vm512, %v510, %v481
    %v514 = vsel %vm512, %v511, %v483
    %vm515 = vcmask 392192
    %v516 = vsel %vm515, %v513, %v489
    %v517 = vsel %vm515, %v514, %v491
    %vm518 = vcmask 523264
    %v519 = vsel %vm518, %v516, %v497
    %v520 = vsel %vm518, %v517, %v499
    %vm521 = vcmask 654336
    %v522 = vsel %vm521, %v519, %v505
    %v523 = vsel %vm521, %v520, %v507
    %v524 = vld [vmem:[#allocation5] sm:$0xff]
    %v525 = vld [vmem:[#allocation5 + $0x8] sm:$0xff]
    %v526 = vmul.f32 %v522, %v524
    %v527 = vmul.f32 %v523, %v525
    %v528 = vld [vmem:[%s7] sm:$0xff]
    %v529 = vld [vmem:[%s7 + $0x8] sm:$0xff]
    %v530 = vld [vmem:[%s7 + $0x10] sm:$0xff]
    %v531 = vld [vmem:[%s7 + $0x18] sm:$0xff]
    %v533 = vsel %vm94, %v528, 0
    %v536 = vsel %vm94, %v529, 0
    %v539 = vsel %vm94, %v530, 0
    %v542 = vsel %vm94, %v531, 0
    %544 = vmatprep.subr.mxu0 0.0
    %545 = vmatpush1.msra.mxu0 0.0
    %546 = vmatprep.subr.mxu0 0.0
    %547 = vmatpush1.msra.mxu0 0.0
    %548 = vmatprep.subr.mxu0 0.0
    %549 = vmatpush1.msra.mxu0 0.0
    %550 = vmatprep.subr.mxu0 0.0
    %551 = vmatpush1.msra.mxu0 0.0
    %552 = vmatprep.subr.mxu0 0.0
    %553 = vmatpush1.msra.mxu0 0.0
    %554 = vmatprep.subr.mxu0 0.0
    %555 = vmatpush1.msra.mxu0 0.0
    %556 = vmatprep.subr.mxu0 0.0
    %557 = vmatpush1.msra.mxu0 0.0
    %558 = vmatprep.subr.mxu0 0.0
    %559 = vmatpush1.msra.mxu0 0.0
    %560 = vmatprep.subr.mxu0 0.0
    %561 = vmatpush1.msra.mxu0 0.0
    %562 = vmatprep.subr.mxu0 0.0
    %563 = vmatpush1.msra.mxu0 0.0
    %564 = vmatprep.subr.mxu0 0.0
    %565 = vmatpush1.msra.mxu0 0.0
    %566 = vmatprep.subr.mxu0 0.0
    %567 = vmatpush1.msra.mxu0 0.0
    %568 = vmatprep.subr.mxu0 0.0
    %569 = vmatpush1.msra.mxu0 0.0
    %570 = vmatprep.subr.mxu0 0.0
    %571 = vmatpush1.msra.mxu0 0.0
    %572 = vmatprep.subr.mxu0 0.0
    %573 = vmatpush1.msra.mxu0 %v527
    %574 = vmatprep.subr.mxu0 0.0
    %575 = vmatpush1.msra.mxu0 %v526
    %576 = vmatprep.subr.mxu0 0.0
    %577 = vmatpush2.msra.mxu0 0.0
    %578 = vmatprep.subr.mxu0 0.0
    %579 = vmatpush2.msra.mxu0 0.0
    %580 = vmatprep.subr.mxu0 0.0
    %581 = vmatpush2.msra.mxu0 0.0
    %582 = vmatprep.subr.mxu0 0.0
    %583 = vmatpush2.msra.mxu0 0.0
    %584 = vmatprep.subr.mxu0 0.0
    %585 = vmatpush2.msra.mxu0 0.0
    %586 = vmatprep.subr.mxu0 0.0
    %587 = vmatpush2.msra.mxu0 0.0
    %588 = vmatprep.subr.mxu0 0.0
    %589 = vmatpush2.msra.mxu0 0.0
    %590 = vmatprep.subr.mxu0 0.0
    %591 = vmatpush2.msra.mxu0 0.0
    %592 = vmatprep.subr.mxu0 0.0
    %593 = vmatpush2.msra.mxu0 0.0
    %594 = vmatprep.subr.mxu0 0.0
    %595 = vmatpush2.msra.mxu0 0.0
    %596 = vmatprep.subr.mxu0 0.0
    %597 = vmatpush2.msra.mxu0 0.0
    %598 = vmatprep.subr.mxu0 0.0
    %599 = vmatpush2.msra.mxu0 0.0
    %600 = vmatprep.subr.mxu0 0.0
    %601 = vmatpush2.msra.mxu0 0.0
    %602 = vmatprep.subr.mxu0 0.0
    %603 = vmatpush2.msra.mxu0 0.0
    %604 = vmatprep.subr.mxu0 0.0
    %605 = vmatpush2.msra.mxu0 0.0
    %606 = vmatprep.subr.mxu0 0.0
    %607 = vmatpush2.msra.mxu0 0.0
    %608 = vmatprep.mubr.f32.mxu0 0.0
    %609 = vmatmul.mubr.f32.gmra.mxu0 %v533
    %v610 = vpop.f32.mrf.mxu0
    %v611 = vadd.f32 0.0, %v610
    %v612 = vpop.f32.mrf.mxu0
    %613 = vmatprep.mubr.f32.mxu0 0.0
    %614 = vmatmul.mubr.f32.gmra.mxu0 %v536
    %v615 = vpop.f32.mrf.mxu0
    %v616 = vadd.f32 0.0, %v615
    %v617 = vpop.f32.mrf.mxu0
    %618 = vmatprep.mubr.f32.mxu0 0.0
    %619 = vmatmul.mubr.f32.gmra.mxu0 %v539
    %v620 = vpop.f32.mrf.mxu0
    %v621 = vadd.f32 0.0, %v620
    %v622 = vpop.f32.mrf.mxu0
    %623 = vmatprep.mubr.f32.mxu0 0.0
    %624 = vmatmul.mubr.f32.gmra.mxu0 %v542
    %v625 = vpop.f32.mrf.mxu0
    %v626 = vadd.f32 0.0, %v625
    %v627 = vpop.f32.mrf.mxu0
    %628 = vdwg.mxu0
    %v629 = vld [vmem:[#allocation7] sm:$0xff]
    %v630 = vld [vmem:[#allocation7 + $0x8] sm:$0xff]
    %v631 = vld [vmem:[#allocation7 + $0x10] sm:$0xff]
    %v632 = vld [vmem:[#allocation7 + $0x18] sm:$0xff]
    %v633 = vld [vmem:[#allocation7 + $0x20] sm:$0xff]
    %v634 = vld [vmem:[#allocation7 + $0x28] sm:$0xff]
    %v635 = vld [vmem:[#allocation7 + $0x30] sm:$0xff]
    %v636 = vld [vmem:[#allocation7 + $0x38] sm:$0xff]
    %v637 = vld [vmem:[#allocation7 + $0x40] sm:$0xff]
    %v638 = vld [vmem:[#allocation7 + $0x48] sm:$0xff]
    %v639 = vld [vmem:[#allocation7 + $0x50] sm:$0xff]
    %v640 = vld [vmem:[#allocation7 + $0x58] sm:$0xff]
    %vm641 = vcmask 785408
    %v643 = vsel %vm641, %v611, 0
    %v646 = vsel %vm641, %v616, 0
    %v649 = vsel %vm641, %v621, 0
    %v652 = vsel %vm641, %v626, 0
    %654 = vmatprep.subr.mxu0 0.0
    %655 = vmatpush1.msra.mxu0 0.0
    %656 = vmatprep.subr.mxu0 0.0
    %657 = vmatpush1.msra.mxu0 0.0
    %658 = vmatprep.subr.mxu0 0.0
    %659 = vmatpush1.msra.mxu0 0.0
    %660 = vmatprep.subr.mxu0 0.0
    %661 = vmatpush1.msra.mxu0 0.0
    %662 = vmatprep.subr.mxu0 0.0
    %663 = vmatpush1.msra.mxu0 %v640
    %664 = vmatprep.subr.mxu0 0.0
    %665 = vmatpush1.msra.mxu0 %v639
    %666 = vmatprep.subr.mxu0 0.0
    %667 = vmatpush1.msra.mxu0 %v638
    %668 = vmatprep.subr.mxu0 0.0
    %669 = vmatpush1.msra.mxu0 %v637
    %670 = vmatprep.subr.mxu0 0.0
    %671 = vmatpush1.msra.mxu0 %v636
    %672 = vmatprep.subr.mxu0 0.0
    %673 = vmatpush1.msra.mxu0 %v635
    %674 = vmatprep.subr.mxu0 0.0
    %675 = vmatpush1.msra.mxu0 %v634
    %676 = vmatprep.subr.mxu0 0.0
    %677 = vmatpush1.msra.mxu0 %v633
    %678 = vmatprep.subr.mxu0 0.0
    %679 = vmatpush1.msra.mxu0 %v632
    %680 = vmatprep.subr.mxu0 0.0
    %681 = vmatpush1.msra.mxu0 %v631
    %682 = vmatprep.subr.mxu0 0.0
    %683 = vmatpush1.msra.mxu0 %v630
    %684 = vmatprep.subr.mxu0 0.0
    %685 = vmatpush1.msra.mxu0 %v629
    %686 = vmatprep.subr.mxu0 0.0
    %687 = vmatpush2.msra.mxu0 0.0
    %688 = vmatprep.subr.mxu0 0.0
    %689 = vmatpush2.msra.mxu0 0.0
    %690 = vmatprep.subr.mxu0 0.0
    %691 = vmatpush2.msra.mxu0 0.0
    %692 = vmatprep.subr.mxu0 0.0
    %693 = vmatpush2.msra.mxu0 0.0
    %694 = vmatprep.subr.mxu0 0.0
    %695 = vmatpush2.msra.mxu0 0.0
    %696 = vmatprep.subr.mxu0 0.0
    %697 = vmatpush2.msra.mxu0 0.0
    %698 = vmatprep.subr.mxu0 0.0
    %699 = vmatpush2.msra.mxu0 0.0
    %700 = vmatprep.subr.mxu0 0.0
    %701 = vmatpush2.msra.mxu0 0.0
    %702 = vmatprep.subr.mxu0 0.0
    %703 = vmatpush2.msra.mxu0 0.0
    %704 = vmatprep.subr.mxu0 0.0
    %705 = vmatpush2.msra.mxu0 0.0
    %706 = vmatprep.subr.mxu0 0.0
    %707 = vmatpush2.msra.mxu0 0.0
    %708 = vmatprep.subr.mxu0 0.0
    %709 = vmatpush2.msra.mxu0 0.0
    %710 = vmatprep.subr.mxu0 0.0
    %711 = vmatpush2.msra.mxu0 0.0
    %712 = vmatprep.subr.mxu0 0.0
    %713 = vmatpush2.msra.mxu0 0.0
    %714 = vmatprep.subr.mxu0 0.0
    %715 = vmatpush2.msra.mxu0 0.0
    %716 = vmatprep.subr.mxu0 0.0
    %717 = vmatpush2.msra.mxu0 0.0
    %718 = vmatprep.mubr.f32.mxu0 0.0
    %719 = vmatmul.mubr.f32.gmra.mxu0 %v643
    %v720 = vpop.f32.mrf.mxu0
    %v721 = vadd.f32 0.0, %v720
    %v722 = vpop.f32.mrf.mxu0
    %723 = vmatprep.mubr.f32.mxu0 0.0
    %724 = vmatmul.mubr.f32.gmra.mxu0 %v646
    %v725 = vpop.f32.mrf.mxu0
    %v726 = vadd.f32 0.0, %v725
    %v727 = vpop.f32.mrf.mxu0
    %728 = vmatprep.mubr.f32.mxu0 0.0
    %729 = vmatmul.mubr.f32.gmra.mxu0 %v649
    %v730 = vpop.f32.mrf.mxu0
    %v731 = vadd.f32 0.0, %v730
    %v732 = vpop.f32.mrf.mxu0
    %733 = vmatprep.mubr.f32.mxu0 0.0
    %734 = vmatmul.mubr.f32.gmra.mxu0 %v652
    %v735 = vpop.f32.mrf.mxu0
    %v736 = vadd.f32 0.0, %v735
    %v737 = vpop.f32.mrf.mxu0
    %738 = vdwg.mxu0
    %v739 = vmul.f32 %v721, %v721
    %v740 = vmul.f32 %v726, %v726
    %v741 = vmul.f32 %v731, %v731
    %v742 = vmul.f32 %v736, %v736
    %v743 = vadd.f32 %v739, %v741
    %v744 = vadd.f32 %v740, %v742
    %v745 = vrsqrt.pop %v743
    %v746 = vmul.f32 %v743, %v745
    %vm747 = vcmp.eq.f32.partialorder %v743, inf
    %v748 = vsel %vm747, %v743, %v746
    %vm749 = vcmp.eq.f32.partialorder %v743, 0.0
    %v750 = vand.u32 %v743, 2147483648
    %v751 = vsel %vm749, %v750, %v748
    %v752 = vrsqrt.pop %v744
    %v753 = vmul.f32 %v744, %v752
    %vm754 = vcmp.eq.f32.partialorder %v744, inf
    %v755 = vsel %vm754, %v744, %v753
    %vm756 = vcmp.eq.f32.partialorder %v744, 0.0
    %v757 = vand.u32 %v744, 2147483648
    %v758 = vsel %vm756, %v757, %v755
    %v759 = vsub.f32 %v751, %v88
    %v760 = vsub.f32 %v758, %v88
    %v761 = vld [vmem:[%s2] sm:$0x1]
    %v763 = vlaneseq
    %v764 = vshrl.u32 %v763, 7
    %v765 = vsub.s32 0, %v764
    %v766 = vrot.slane %v761, %v765
    %v768 = vmul.f32 %v759, %v766
    %v769 = vmul.f32 %v760, %v766
    %770 = vst.msk [vmem:[#allocation8] sm:$0xff] %vm641, %v768
    %771 = vst.msk [vmem:[#allocation8 + $0x8] sm:$0xff] %vm641, %v769
    // Predicated region
    $region50: #{tpu_custom_call.1} parent=1 // pred_check
      _
    $region51: #{tpu_custom_call.1} parent=1 // pred_check_branch
      %773 = sbr.rel (0) target = $region53
    $region52: #{tpu_custom_call.1} parent=1 // pred_region
      %s775 = ssub.s32 256, 256
      %776 = vsyncadd [#allocation4], %s775
      %s777 = sshll.u32 [#allocation8], 4
      %s778 = int_to_ptr.vmem [resolvable:$true] %s777
      %783 = dma.vmem_to_hbm [thread:$0]  %s778, 256, %s9, [#allocation4], 128, 128, 8
    $region53: #{tpu_custom_call.1} parent=1 // pred_fallthru
      _
    // Predicated region
    $region54: #{tpu_custom_call.1} parent=1 // pred_check
      _
    $region55: #{tpu_custom_call.1} parent=1 // pred_check_branch
      %785 = sbr.rel (0) target = $region57
    $region56: #{tpu_custom_call.1} parent=1 // pred_region
      %786 = dma.done [#allocation4], 256
    $region57: #{tpu_custom_call.1} parent=1 // pred_fallthru
      _
    %787 = vsyncpa [#allocation3], 1
    %788 = vsyncpa [#allocation6], 1
    %789 = vsyncpa [#allocation4], 1

</llo_original>
